<compile_context>
chip_gen: v7x
topology: tpu7x:2x2x1
jax: 0.10.0
libtpu: 0.0.40
codegen_flags: <defaults>
</compile_context>

<pallas_src>
import jax
import jax.numpy as jnp
from jax import lax
from jax.experimental import pallas as pl
from jax.experimental.pallas import tpu as pltpu

# Problem sizes (small, consistent with the module; in == out -> add fusion).
B, CIN, H, W = 2, 24, 8, 8
GROUPS = 3
COUT = 24
CMID = COUT // 4          # 6
KH = KW = 3
NPIX = B * H * W          # 128 = flattened (batch, y, x) -> lane axis
EPS = 1e-5


# --------------------------------------------------------------------------
# Kernel
# --------------------------------------------------------------------------
def _make_kernel(np_roll_convention: bool):
    """Build the fused kernel with the dwconv tap shifts baked in statically."""
    shifts = []
    for ky in range(KH):
        for kx in range(KW):
            s = (ky - 1) * W + (kx - 1)          # flat-index offset of this tap
            amt = (-s) % NPIX if np_roll_convention else s % NPIX
            shifts.append(amt)

    def kernel(xcol_ref, w1_ref, b1_ref, wf_ref, bf_ref, mask_ref, o_ref):
        xcol = xcol_ref[...]                                   # (9*CIN, 128)

        # gconv1 (3x3, stage=2) + BN + channel-shuffle + ReLU: one K=216 pass.
        mid = jnp.maximum(
            jnp.dot(w1_ref[...], xcol, preferred_element_type=jnp.float32)
            + b1_ref[...],
            0.0)                                               # (CMID, 128)

        # dwconv(3x3, g=3) + BN + gconv2(1x1, g=3) + BN: the two affine stages
        # are collapsed into nine per-tap (COUT, CMID) weights + one bias.
        acc = bf_ref[...]                                      # (COUT, 128)
        for t in range(KH * KW):
            if shifts[t] == 0:
                shifted = mid
            else:
                # Lane rotate (XLU slot); out-of-image / cross-batch lanes are
                # zeroed by the host-precomputed validity mask.
                shifted = pltpu.roll(mid, shifts[t], axis=1)
            acc = acc + jnp.dot(wf_ref[t], shifted * mask_ref[t],
                                preferred_element_type=jnp.float32)

        # Identity shortcut == centre tap rows of the im2col input (CIN==COUT).
        shortcut = xcol[4 * CIN:5 * CIN, :]                    # (COUT, 128)
        o_ref[...] = jnp.maximum(acc + shortcut, 0.0)

    return kernel


def _roll_is_numpy_convention() -> bool:
    """One-time probe of pltpu.roll's rotation direction (numpy convention
    means result[i] == x[(i - shift) % n]).  The static tap shifts are derived
    from whichever convention the installed Mosaic build implements."""
    def probe(x_ref, o_ref):
        o_ref[...] = pltpu.roll(x_ref[...], 1, axis=1)

    x = lax.broadcasted_iota(jnp.float32, (8, 128), 1)
    y = pl.pallas_call(
        probe,
        out_shape=jax.ShapeDtypeStruct((8, 128), jnp.float32),
        in_specs=[pl.BlockSpec(memory_space=pltpu.MemorySpace.VMEM)],
        out_specs=pl.BlockSpec(memory_space=pltpu.MemorySpace.VMEM),
    )(x)
    return bool(y[0, 0] == 127.0)


def shufflenet_unit(x_nchw, kparams, np_roll_convention):
    """NCHW in / NCHW out wrapper: layout plumbing + one pallas_call."""
    w1t, b1b, wft, bfb, masks = kparams

    x = jnp.transpose(x_nchw, (0, 2, 3, 1))                    # NCHW -> NHWC
    xpad = jnp.pad(x, ((0, 0), (1, 1), (1, 1), (0, 0)))
    # im2col, transposed: xcol[t*CIN+ci, b*H*W + y*W + x] = xpad[b, y+ky, x+kx, ci]
    cols = [xpad[:, ky:ky + H, kx:kx + W, :].reshape(NPIX, CIN)
            for ky in range(KH) for kx in range(KW)]
    xcol = jnp.concatenate(cols, axis=1).T                     # (9*CIN, 128)

    def vmem():
        return pl.BlockSpec(memory_space=pltpu.MemorySpace.VMEM)

    out = pl.pallas_call(
        _make_kernel(np_roll_convention),
        out_shape=jax.ShapeDtypeStruct((COUT, NPIX), jnp.float32),
        in_specs=[vmem() for _ in range(6)],
        out_specs=vmem(),
    )(xcol, w1t, b1b, wft, bfb, masks)                         # (COUT, 128)

    return jnp.transpose(out.reshape(COUT, B, H, W), (1, 0, 2, 3))   # -> NCHW


# ---------------- parameter construction (deterministic, synthetic) ----------
def make_params(key):
    ks = jax.random.split(key, 9)
    std = 0.1

    def bn_params(k, c):
        k1, k2, k3, k4 = jax.random.split(k, 4)
        gamma = 1.0 + 0.1 * jax.random.normal(k1, (c,))
        beta = 0.1 * jax.random.normal(k2, (c,))
        mean = 0.1 * jax.random.normal(k3, (c,))
        var = 0.5 + 0.5 * jnp.abs(jax.random.normal(k4, (c,)))
        return gamma, beta, mean, var

    return dict(
        # torch layouts: Conv2d weight = (out, in/groups, kh, kw), bias = (out,)
        w1=jax.random.normal(ks[0], (CMID, CIN, KH, KW)) * std,
        b1=jax.random.normal(ks[1], (CMID,)) * std,
        wdw=jax.random.normal(ks[2], (CMID, CMID // GROUPS, KH, KW)) * std,
        bdw=jax.random.normal(ks[3], (CMID,)) * std,
        w2=jax.random.normal(ks[4], (COUT, CMID // GROUPS, 1, 1)) * std,
        b2=jax.random.normal(ks[5], (COUT,)) * std,
        bn1=bn_params(ks[6], CMID),
        bn2=bn_params(ks[7], CMID),
        bn3=bn_params(ks[8], COUT),
    )


def _fold_bn(bn, conv_bias):
    gamma, beta, mean, var = bn
    s = gamma / jnp.sqrt(var + EPS)
    b = (conv_bias - mean) * s + beta
    return s, b


def build_kernel_params(p):
    """Host-side glue: fold BN scales into weights, channel shuffle into the
    gconv1 column order, collapse dwconv->gconv2 into per-tap fused weights,
    precompute tap validity masks, and lay everything out as (C, pixels)."""
    cpg = CMID // GROUPS      # 2
    opg = COUT // GROUPS      # 8

    # ---- gconv1: (9*CIN, CMID), BN scale folded in, shuffle as column perm.
    w1 = jnp.transpose(p["w1"], (2, 3, 1, 0)).reshape(KH * KW * CIN, CMID)
    s1, b1 = _fold_bn(p["bn1"], p["b1"])
    w1 = w1 * s1[None, :]
    perm = jnp.array([g * cpg + k for k in range(cpg) for g in range(GROUPS)],
                     dtype=jnp.int32)
    w1, b1 = w1[:, perm], b1[perm]
    w1t = w1.T                                                  # (CMID, 9*CIN)
    b1b = jnp.broadcast_to(b1[:, None], (CMID, NPIX))

    # ---- dwconv grouped -> dense block-diagonal (9, CMID, CMID), scaled by BN2.
    wdw = jnp.zeros((KH * KW, CMID, CMID))
    for g in range(GROUPS):
        blk = p["wdw"][g * cpg:(g + 1) * cpg]                   # (cpg, cpg, 3, 3)
        blk = jnp.transpose(blk, (2, 3, 1, 0)).reshape(KH * KW, cpg, cpg)
        wdw = wdw.at[:, g * cpg:(g + 1) * cpg, g * cpg:(g + 1) * cpg].set(blk)
    s2, b2 = _fold_bn(p["bn2"], p["bdw"])
    wdw = wdw * s2[None, None, :]

    # ---- gconv2 grouped 1x1 -> dense block-diagonal (CMID, COUT), scaled by BN3.
    w2 = jnp.zeros((CMID, COUT))
    for g in range(GROUPS):
        blk = p["w2"][g * opg:(g + 1) * opg, :, 0, 0]           # (opg, cpg)
        w2 = w2.at[g * cpg:(g + 1) * cpg, g * opg:(g + 1) * opg].set(blk.T)
    s3, b3 = _fold_bn(p["bn3"], p["b2"])
    w2 = w2 * s3[None, :]

    # ---- collapse dwconv -> gconv2 (both affine after BN fold) into one stage.
    wft = jnp.einsum("tim,mo->toi", wdw, w2)                    # (9, COUT, CMID)
    bf = b2 @ w2 + b3                                           # (COUT,)
    bfb = jnp.broadcast_to(bf[:, None], (COUT, NPIX))

    # ---- per-tap validity masks over the flattened (b, y, x) lane axis.
    n = jnp.arange(NPIX)
    yy, xx = (n % (H * W)) // W, n % W
    masks = []
    for ky in range(KH):
        for kx in range(KW):
            dy, dx = ky - 1, kx - 1
            valid = ((yy + dy >= 0) & (yy + dy < H) &
                     (xx + dx >= 0) & (xx + dx < W))
            masks.append(jnp.broadcast_to(valid[None, :], (CMID, NPIX)))
    masks = jnp.stack(masks, axis=0).astype(jnp.float32)        # (9, CMID, 128)

    f32 = lambda a: a.astype(jnp.float32)
    return tuple(f32(a) for a in (w1t, b1b, wft, bfb, masks))


# ---------------- pure-JAX reference (mirrors the PyTorch forward) ------------
def ref_forward(x, p):
    def conv(x, w, b, groups=1):
        pad = [(1, 1), (1, 1)] if w.shape[-1] == 3 else [(0, 0), (0, 0)]
        y = lax.conv_general_dilated(
            x, w, (1, 1), pad,
            dimension_numbers=("NCHW", "OIHW", "NCHW"),
            feature_group_count=groups)
        return y + b[None, :, None, None]

    def bn(x, prm):
        gamma, beta, mean, var = prm
        inv = gamma / jnp.sqrt(var + EPS)
        return (x - mean[None, :, None, None]) * inv[None, :, None, None] \
            + beta[None, :, None, None]

    out = jnp.maximum(bn(conv(x, p["w1"], p["b1"]), p["bn1"]), 0.0)
    bs, c, h, w = out.shape
    out = out.reshape(bs, GROUPS, c // GROUPS, h, w)
    out = out.transpose(0, 2, 1, 3, 4).reshape(bs, c, h, w)     # channel shuffle
    out = bn(conv(out, p["wdw"], p["bdw"], GROUPS), p["bn2"])
    out = bn(conv(out, p["w2"], p["b2"], GROUPS), p["bn3"])
    return jnp.maximum(out + x, 0.0)                            # add fusion + relu


if __name__ == "__main__":
    key = jax.random.PRNGKey(0)
    kx_, kp = jax.random.split(key)
    x = jax.random.normal(kx_, (B, CIN, H, W), jnp.float32)     # NCHW input
    params = make_params(kp)
    kparams = build_kernel_params(params)

    np_conv = _roll_is_numpy_convention()
    out = shufflenet_unit(x, kparams, np_conv)
    out = jax.block_until_ready(out)

    ref = ref_forward(x, params)
    assert out.shape == (B, COUT, H, W)
    max_err = float(jnp.max(jnp.abs(out - ref)))
    assert max_err < 1e-4, f"mismatch vs reference: {max_err}"
    print("KERNEL_OK")
</pallas_src>

<mosaic_0001>
module attributes {stable_mosaic.version = 11 : i64} {
  func.func @probe(%arg0: memref<8x128xf32, #tpu.memory_space<vmem>>, %arg1: memref<8x128xf32, #tpu.memory_space<vmem>>) attributes {dimension_semantics = [], scalar_prefetch = 0 : i64, scratch_operands = 0 : i64, tpu.core_type = #tpu.core_type<tc>} {
    %c0 = arith.constant 0 : index
    %c0_0 = arith.constant 0 : index
    %0 = vector.load %arg0[%c0, %c0_0] : memref<8x128xf32, #tpu.memory_space<vmem>>, vector<8x128xf32>
    %c1_i32 = arith.constant 1 : i32
    %1 = tpu.dynamic_rotate %0 by %c1_i32 dim 1 : vector<8x128xf32>, i32 -> vector<8x128xf32>
    %c0_1 = arith.constant 0 : index
    %c0_2 = arith.constant 0 : index
    %2 = vector.load %arg1[%c0_1, %c0_2] : memref<8x128xf32, #tpu.memory_space<vmem>>, vector<8x128xf32>
    tpu.vector_store %arg1[%c0_1, %c0_2], %1 {strides = array<i32>} : memref<8x128xf32, #tpu.memory_space<vmem>>, vector<8x128xf32>,
    return
  }
}

</mosaic_0001>

<llo_original>
// kernel: tpu_custom_call.1
$region0: #{tpu_custom_call.1}
  #allocation0 [shape = 'u32[]', space=smem, size = 0x4, offset = 0x4, fixed_abs, tag = 'smem constant byte address 0x4 - core index']
  #allocation1 [shape = 'u32[144,128]{1,0:T(1,128)}', space=vmem, size = 0x12000, scoped, tag = 'internal scratch']
  %s0 = inlined_call_operand.hbm [shape: f32[8,128], index: 0, kind: input, shape index: {}]
  %s1 = inlined_call_operand.hbm [shape: f32[8,128], index: 1, kind: output, shape index: {}]
  %s2 = sld [smem:[#allocation0]]
  $region18: #{tpu_custom_call.1} parent=0
    _
  %s4 = ssub.s32 1, %s2
  %s5 = scalar_select 0, %s4, %s2
  $region1: #{tpu_custom_call.1} parent=0
    #allocation2 [shape = 'u8[4096]{0}', space=vmem, size = 0x1000, scoped, tag = 'input window, operand 0, single buffered']
    #allocation3 [shape = 's32[1]{0}', space=sflag, size = 0x4, scoped, tag = 'scoped memory for tpu_custom_call.1']
    #allocation4 [shape = 's32[1]{0}', space=sflag, size = 0x4, scoped, tag = 'scoped memory for tpu_custom_call.1']
    #allocation5 [shape = 'u8[4096]{0}', space=vmem, size = 0x1000, scoped, tag = 'output window, operand 0, single buffered']
    %6 = vsyncpa [#allocation3], 0
    %7 = vsyncpa [#allocation4], 0
    // Predicated region
    $region2: #{tpu_custom_call.1} parent=1 // pred_check
      _
    $region3: #{tpu_custom_call.1} parent=1 // pred_check_branch
      %9 = sbr.rel (0) target = $region5
    $region4: #{tpu_custom_call.1} parent=1 // pred_region
      %s11 = ssub.s32 128, 128
      %12 = vsyncadd [#allocation3], %s11
      %s14 = sshll.u32 [#allocation2], 4
      %s15 = int_to_ptr.vmem [resolvable:$true] %s14
      %17 = dma.hbm_to_vmem [thread:$0]  %s0, 128, %s15, [#allocation3]
    $region5: #{tpu_custom_call.1} parent=1 // pred_fallthru
      _
    // Predicated region
    $region6: #{tpu_custom_call.1} parent=1 // pred_check
      _
    $region7: #{tpu_custom_call.1} parent=1 // pred_check_branch
      %19 = sbr.rel (0) target = $region9
    $region8: #{tpu_custom_call.1} parent=1 // pred_region
      %20 = dma.done [#allocation3], 128
    $region9: #{tpu_custom_call.1} parent=1 // pred_fallthru
      _
    %v21 = vld [vmem:[#allocation2] sm:$0xff]
    %22 = vrot.lane.b32.xlu0 %v21, 1
    %v23 = vpop.permute.xlu0 %22
    %24 = vst [vmem:[#allocation5] sm:$0xff] %v23
    // Predicated region
    $region10: #{tpu_custom_call.1} parent=1 // pred_check
      _
    $region11: #{tpu_custom_call.1} parent=1 // pred_check_branch
      %26 = sbr.rel (0) target = $region13
    $region12: #{tpu_custom_call.1} parent=1 // pred_region
      %s28 = ssub.s32 128, 128
      %29 = vsyncadd [#allocation4], %s28
      %s31 = sshll.u32 [#allocation5], 4
      %s32 = int_to_ptr.vmem [resolvable:$true] %s31
      %34 = dma.vmem_to_hbm [thread:$0]  %s32, 128, %s1, [#allocation4]
    $region13: #{tpu_custom_call.1} parent=1 // pred_fallthru
      _
    // Predicated region
    $region14: #{tpu_custom_call.1} parent=1 // pred_check
      _
    $region15: #{tpu_custom_call.1} parent=1 // pred_check_branch
      %36 = sbr.rel (0) target = $region17
    $region16: #{tpu_custom_call.1} parent=1 // pred_region
      %37 = dma.done [#allocation4], 128
    $region17: #{tpu_custom_call.1} parent=1 // pred_fallthru
      _
    %38 = vsyncpa [#allocation3], 1
    %39 = vsyncpa [#allocation4], 1

</llo_original>
